<compile_context>
chip_gen: v5e
topology: v5e:2x2
jax: 0.10.0
libtpu: 0.0.40
codegen_flags: <defaults>
</compile_context>

<pallas_src>
import functools

import jax
import jax.numpy as jnp
from jax.experimental import pallas as pl
from jax.experimental.pallas import tpu as pltpu


def _round_up(n, m):
    return ((n + m - 1) // m) * m


# -----------------------------------------------------------------------------
# Kernel
# -----------------------------------------------------------------------------
def _ffn_kernel(x_ref, w1_ref, b1_ref, w2_ref, b2_ref, o_ref, acc_ref):
    # x_ref : [tm, dim_p]    w1_ref: [dim_p, th]   b1_ref: [1, th]
    # w2_ref: [th, dim_p]    b2_ref: [1, dim_p]
    # o_ref : [tm, dim_p]    acc_ref: [tm, dim_p] f32 accumulator (scratch)
    h_idx = pl.program_id(1)

    # Linear 1 on this hidden tile: native-dtype MXU operands, f32 accumulate.
    h = jnp.dot(x_ref[...], w1_ref[...], preferred_element_type=jnp.float32)
    h = h + b1_ref[...].astype(jnp.float32)

    # Exact erf-based GELU (torch.nn.GELU default), computed in f32.
    h = 0.5 * h * (1.0 + jax.lax.erf(h * jnp.float32(0.7071067811865475)))

    # Dropout(p=0.0) is the identity -> no-op.

    # Linear 2 partial product for this hidden tile, f32 accumulation.
    p2 = jnp.dot(h.astype(w2_ref.dtype), w2_ref[...],
                 preferred_element_type=jnp.float32)

    # First hidden step stores directly (saves one full acc read+write per
    # row tile); subsequent steps accumulate.
    @pl.when(h_idx == 0)
    def _():
        acc_ref[...] = p2

    @pl.when(h_idx > 0)
    def _():
        acc_ref[...] += p2

    # Dropout(p=0.0) is the identity -> no-op.

    # Finalize on the last hidden tile: add output bias, cast, lane-dense store.
    @pl.when(h_idx == pl.num_programs(1) - 1)
    def _():
        o_ref[...] = (acc_ref[...] + b2_ref[...].astype(jnp.float32)
                      ).astype(o_ref.dtype)


# -----------------------------------------------------------------------------
# Tile selection / VMEM budgeting
# -----------------------------------------------------------------------------
def _vmem_capacity_bytes():
    try:
        return int(pltpu.get_tpu_info().vmem_capacity_bytes)
    except Exception:
        # Conservative default: v7x per-TensorCore VMEM.
        return 64 * 1024 * 1024


def _select_tiles(n_rows, dim_p, hid_p, x_bytes, w_bytes, row_align, budget,
                  max_tm):
    """Pick (tm, th) so the double-buffered tiles + f32 accumulator fit budget."""

    def weight_bytes(th):
        # w1 + w2 tiles (double-buffered) + biases.
        return 2 * (2 * dim_p * th + th + dim_p) * w_bytes

    # x tile + out tile (both double-buffered) + f32 accumulator, per row.
    per_row = dim_p * (4 * x_bytes + 4)

    rows_p_min = _round_up(n_rows, row_align)
    # Arithmetic-intensity target for the row tile (ridge-ish for bf16/f32).
    tm_target = min(max_tm, rows_p_min, 512 if x_bytes <= 2 else 256)

    # Hidden-tile candidates: prefer collapsing the hidden grid entirely
    # (weights DMA'd once, no accumulator re-streaming) when it fits.
    th_cands = sorted({hid_p, min(hid_p, 1024), min(hid_p, 512),
                       min(hid_p, 256), 128}, reverse=True)

    th = 128
    chosen = False
    for target in (tm_target, min(tm_target, 256), row_align):
        for cand in th_cands:
            if weight_bytes(cand) + target * per_row <= budget:
                th = cand
                chosen = True
                break
        if chosen:
            break

    tm_fit = max(row_align, (budget - weight_bytes(th)) // per_row)
    tm = min(tm_fit, max_tm, rows_p_min)
    # Keep >= 2 row tiles when the problem has enough rows so the "parallel"
    # row axis can shard across both TensorCores on v7x (free elsewhere).
    if n_rows >= 2 * row_align:
        tm = min(tm, _round_up((n_rows + 1) // 2, row_align))
    tm = max(row_align, (tm // row_align) * row_align)
    return int(tm), int(th)


# -----------------------------------------------------------------------------
# Wrappers
# -----------------------------------------------------------------------------
def prepare_ffn_params(w1, b1, w2, b2):
    """Pad parameters to lane-aligned shapes ONCE (out of the per-call path).

    w1: [dim, hidden], b1: [hidden], w2: [hidden, dim], b2: [dim].
    Returns (w1p, b1p, w2p, b2p) with dim/hidden padded to multiples of 128 and
    biases reshaped to 2-D rows. No-op copies are skipped when already aligned.
    """
    dim, hidden = w1.shape
    dim_p = _round_up(dim, 128)
    hid_p = _round_up(hidden, 128)
    if dim_p != dim or hid_p != hidden:
        w1 = jnp.pad(w1, ((0, dim_p - dim), (0, hid_p - hidden)))
        w2 = jnp.pad(w2, ((0, hid_p - hidden), (0, dim_p - dim)))
        b1 = jnp.pad(b1, (0, hid_p - hidden))
        b2 = jnp.pad(b2, (0, dim_p - dim))
    return w1, b1.reshape(1, hid_p), w2, b2.reshape(1, dim_p)


@functools.partial(jax.jit, static_argnames=("max_block_rows",))
def feed_forward(x, w1p, b1p, w2p, b2p, *, max_block_rows=1024):
    """x: [..., dim]; params pre-padded via prepare_ffn_params."""
    orig_shape = x.shape
    dim = orig_shape[-1]
    dim_p, hid_p = w1p.shape

    x2 = x.reshape(-1, dim)
    n_rows = x2.shape[0]

    x_bytes = jnp.dtype(x.dtype).itemsize
    w_bytes = jnp.dtype(w1p.dtype).itemsize
    row_align = 16 if x.dtype == jnp.bfloat16 else 8

    cap = _vmem_capacity_bytes()
    budget = int(cap * 0.7)          # headroom for compiler scratch / pipeline
    tm, th = _select_tiles(n_rows, dim_p, hid_p, x_bytes, w_bytes, row_align,
                           budget, max_block_rows)

    n_rows_p = _round_up(n_rows, tm)
    hid_grid = hid_p // th if hid_p % th == 0 else _round_up(hid_p, th) // th
    hid_pp = hid_grid * th   # equals hid_p (hid_p and th are 128-multiples)

    # Zero-pad activations: padded rows/features contribute exactly zero and
    # are sliced off below. (Weights were padded once in prepare_ffn_params.)
    x2p = jnp.pad(x2, ((0, n_rows_p - n_rows), (0, dim_p - dim)))

    grid = (n_rows_p // tm, hid_pp // th)

    # Explicit VMEM limit sized from the actual tile footprint (+margin).
    footprint = (2 * (2 * dim_p * th + th + dim_p) * w_bytes
                 + tm * dim_p * (4 * x_bytes + 4))
    vmem_limit = int(min(cap * 0.9,
                         max(footprint + footprint // 4 + (2 << 20), 32 << 20)))

    # Advisory cost estimate for XLA's surrounding-op scheduler.
    weight_passes = grid[0] if grid[1] > 1 else 1
    cost = pl.CostEstimate(
        flops=4 * n_rows * dim_p * hid_pp,
        transcendentals=n_rows * hid_pp,
        bytes_accessed=(x2p.size * x_bytes
                        + n_rows_p * dim_p * x_bytes
                        + weight_passes * (w1p.size + w2p.size
                                           + b1p.size + b2p.size) * w_bytes),
    )

    out = pl.pallas_call(
        _ffn_kernel,
        out_shape=jax.ShapeDtypeStruct((n_rows_p, dim_p), x.dtype),
        grid_spec=pltpu.PrefetchScalarGridSpec(
            num_scalar_prefetch=0,
            grid=grid,
            in_specs=[
                pl.BlockSpec((tm, dim_p), lambda i, h: (i, 0)),   # x row tile
                pl.BlockSpec((dim_p, th), lambda i, h: (0, h)),   # w1 hidden tile
                pl.BlockSpec((1, th), lambda i, h: (0, h)),       # b1 hidden tile
                pl.BlockSpec((th, dim_p), lambda i, h: (h, 0)),   # w2 hidden tile
                pl.BlockSpec((1, dim_p), lambda i, h: (0, 0)),    # b2 (invariant)
            ],
            out_specs=pl.BlockSpec((tm, dim_p), lambda i, h: (i, 0)),
            scratch_shapes=[pltpu.VMEM((tm, dim_p), jnp.float32)],
        ),
        compiler_params=pltpu.CompilerParams(
            dimension_semantics=("parallel", "arbitrary"),
            vmem_limit_bytes=vmem_limit),
        cost_estimate=cost,
    )(x2p, w1p, b1p, w2p, b2p)

    out = out[:n_rows, :dim]
    return out.reshape(orig_shape)


if __name__ == "__main__":
    # Small shapes consistent with the module: tokens with feature `dim`.
    batch, seq, dim, hidden = 2, 8, 32, 64

    key = jax.random.PRNGKey(0)
    kx, kw1, kb1, kw2, kb2 = jax.random.split(key, 5)

    x = jax.random.normal(kx, (batch, seq, dim), dtype=jnp.float32)

    # Deterministic parameter init (uniform like torch.nn.Linear's default).
    lim1 = 1.0 / (dim ** 0.5)
    lim2 = 1.0 / (hidden ** 0.5)
    w1 = jax.random.uniform(kw1, (dim, hidden), minval=-lim1, maxval=lim1, dtype=jnp.float32)
    b1 = jax.random.uniform(kb1, (hidden,), minval=-lim1, maxval=lim1, dtype=jnp.float32)
    w2 = jax.random.uniform(kw2, (hidden, dim), minval=-lim2, maxval=lim2, dtype=jnp.float32)
    b2 = jax.random.uniform(kb2, (dim,), minval=-lim2, maxval=lim2, dtype=jnp.float32)

    # Pad/prepare parameters ONCE (out of the per-call hot path).
    w1p, b1p, w2p, b2p = prepare_ffn_params(w1, b1, w2, b2)

    out = feed_forward(x, w1p, b1p, w2p, b2p)
    out = jax.block_until_ready(out)

    # Reference in plain JAX: Linear -> exact GELU -> Linear (dropout p=0 is id).
    ref = jnp.dot(x, w1, preferred_element_type=jnp.float32) + b1
    ref = 0.5 * ref * (1.0 + jax.lax.erf(ref / jnp.sqrt(2.0)))
    ref = jnp.dot(ref, w2, preferred_element_type=jnp.float32) + b2
    assert jnp.allclose(out, ref, atol=1e-5, rtol=1e-5), "mismatch vs reference"

    print("KERNEL_OK")
</pallas_src>

<mosaic_0001>
module attributes {stable_mosaic.version = 11 : i64} {
  func.func @_ffn_kernel(%arg0: i32, %arg1: i32, %arg2: memref<8x128xf32, #tpu.memory_space<vmem>>, %arg3: memref<128x128xf32, #tpu.memory_space<vmem>>, %arg4: memref<1x128xf32, #tpu.memory_space<vmem>>, %arg5: memref<128x128xf32, #tpu.memory_space<vmem>>, %arg6: memref<1x128xf32, #tpu.memory_space<vmem>>, %arg7: memref<8x128xf32, #tpu.memory_space<vmem>>, %arg8: memref<8x128xf32, #tpu.memory_space<vmem>>) attributes {dimension_semantics = [#tpu.dimension_semantics<parallel>, #tpu.dimension_semantics<arbitrary>], iteration_bounds = array<i64: 2, 1>, scalar_prefetch = 0 : i64, scratch_operands = 1 : i64, tpu.core_type = #tpu.core_type<tc>, window_params = [{transform_indices = @transform_0, window_bounds = array<i64: 8, 128>}, {transform_indices = @transform_1, window_bounds = array<i64: 128, 128>}, {transform_indices = @transform_2, window_bounds = array<i64: 1, 128>}, {transform_indices = @transform_3, window_bounds = array<i64: 128, 128>}, {pipeline_mode = #tpu.pipeline_mode<synchronous>, transform_indices = @transform_4, window_bounds = array<i64: 1, 128>}, {transform_indices = @transform_5, window_bounds = array<i64: 8, 128>}]} {
    %c0 = arith.constant 0 : index
    %c0_0 = arith.constant 0 : index
    %0 = vector.load %arg2[%c0, %c0_0] : memref<8x128xf32, #tpu.memory_space<vmem>>, vector<8x128xf32>
    %c0_1 = arith.constant 0 : index
    %c0_2 = arith.constant 0 : index
    %1 = vector.load %arg3[%c0_1, %c0_2] : memref<128x128xf32, #tpu.memory_space<vmem>>, vector<128x128xf32>
    %cst = arith.constant dense<0.000000e+00> : vector<8x128xf32>
    %2 = tpu.matmul %0, %1, %cst {dimension_numbers = #tpu.dot_dimension_numbers<[1], [0], [0], [1], [0, 0, 1, 1], [], []>} : vector<8x128xf32>, vector<128x128xf32>, vector<8x128xf32> -> vector<8x128xf32>
    %c0_3 = arith.constant 0 : index
    %c0_4 = arith.constant 0 : index
    %3 = vector.load %arg4[%c0_3, %c0_4] : memref<1x128xf32, #tpu.memory_space<vmem>>, vector<1x128xf32>
    %4 = vector.broadcast %3 : vector<1x128xf32> to vector<8x128xf32>
    %5 = arith.addf %2, %4 : vector<8x128xf32>
    %cst_5 = arith.constant 5.000000e-01 : f32
    %6 = vector.broadcast %cst_5 : f32 to vector<8x128xf32>
    %7 = arith.mulf %6, %5 : vector<8x128xf32>
    %cst_6 = arith.constant 0.707106769 : f32
    %8 = vector.broadcast %cst_6 : f32 to vector<8x128xf32>
    %9 = arith.mulf %5, %8 : vector<8x128xf32>
    %10 = math.erf %9 : vector<8x128xf32>
    %cst_7 = arith.constant 1.000000e+00 : f32
    %11 = vector.broadcast %cst_7 : f32 to vector<8x128xf32>
    %12 = arith.addf %11, %10 : vector<8x128xf32>
    %13 = arith.mulf %7, %12 : vector<8x128xf32>
    %c0_8 = arith.constant 0 : index
    %c0_9 = arith.constant 0 : index
    %14 = vector.load %arg5[%c0_8, %c0_9] : memref<128x128xf32, #tpu.memory_space<vmem>>, vector<128x128xf32>
    %cst_10 = arith.constant dense<0.000000e+00> : vector<8x128xf32>
    %15 = tpu.matmul %13, %14, %cst_10 {dimension_numbers = #tpu.dot_dimension_numbers<[1], [0], [0], [1], [0, 0, 1, 1], [], []>} : vector<8x128xf32>, vector<128x128xf32>, vector<8x128xf32> -> vector<8x128xf32>
    %c0_i32 = arith.constant 0 : i32
    %16 = arith.cmpi eq, %arg1, %c0_i32 : i32
    %17 = arith.extui %16 : i1 to i32
    %c0_i32_11 = arith.constant 0 : i32
    %18 = arith.cmpi ne, %17, %c0_i32_11 : i32
    scf.if %18 {
      %c0_16 = arith.constant 0 : index
      %c0_17 = arith.constant 0 : index
      %25 = vector.load %arg8[%c0_16, %c0_17] : memref<8x128xf32, #tpu.memory_space<vmem>>, vector<8x128xf32>
      tpu.vector_store %arg8[%c0_16, %c0_17], %15 {strides = array<i32>} : memref<8x128xf32, #tpu.memory_space<vmem>>, vector<8x128xf32>,
    } else {
    }
    %c0_i32_12 = arith.constant 0 : i32
    %19 = arith.cmpi sgt, %arg1, %c0_i32_12 : i32
    %20 = arith.extui %19 : i1 to i32
    %c0_i32_13 = arith.constant 0 : i32
    %21 = arith.cmpi ne, %20, %c0_i32_13 : i32
    scf.if %21 {
      %c0_16 = arith.constant 0 : index
      %c0_17 = arith.constant 0 : index
      %25 = vector.load %arg8[%c0_16, %c0_17] : memref<8x128xf32, #tpu.memory_space<vmem>>, vector<8x128xf32>
      %26 = arith.addf %25, %15 : vector<8x128xf32>
      %c0_18 = arith.constant 0 : index
      %c0_19 = arith.constant 0 : index
      %27 = vector.load %arg8[%c0_18, %c0_19] : memref<8x128xf32, #tpu.memory_space<vmem>>, vector<8x128xf32>
      tpu.vector_store %arg8[%c0_18, %c0_19], %26 {strides = array<i32>} : memref<8x128xf32, #tpu.memory_space<vmem>>, vector<8x128xf32>,
    } else {
    }
    %c0_i32_14 = arith.constant 0 : i32
    %22 = arith.cmpi eq, %arg1, %c0_i32_14 : i32
    %23 = arith.extui %22 : i1 to i32
    %c0_i32_15 = arith.constant 0 : i32
    %24 = arith.cmpi ne, %23, %c0_i32_15 : i32
    scf.if %24 {
      %c0_16 = arith.constant 0 : index
      %c0_17 = arith.constant 0 : index
      %25 = vector.load %arg8[%c0_16, %c0_17] : memref<8x128xf32, #tpu.memory_space<vmem>>, vector<8x128xf32>
      %c0_18 = arith.constant 0 : index
      %c0_19 = arith.constant 0 : index
      %26 = vector.load %arg6[%c0_18, %c0_19] : memref<1x128xf32, #tpu.memory_space<vmem>>, vector<1x128xf32>
      %27 = vector.broadcast %26 : vector<1x128xf32> to vector<8x128xf32>
      %28 = arith.addf %25, %27 : vector<8x128xf32>
      %c0_20 = arith.constant 0 : index
      %c0_21 = arith.constant 0 : index
      %29 = vector.load %arg7[%c0_20, %c0_21] : memref<8x128xf32, #tpu.memory_space<vmem>>, vector<8x128xf32>
      tpu.vector_store %arg7[%c0_20, %c0_21], %28 {strides = array<i32>} : memref<8x128xf32, #tpu.memory_space<vmem>>, vector<8x128xf32>,
    } else {
    }
    return
  }
  func.func @transform_0(%arg0: i32, %arg1: i32) -> (i32, i32) {
    %c0_i32 = arith.constant 0 : i32
    %c0_i32_0 = arith.constant 0 : i32
    return %arg0, %c0_i32 : i32, i32
  }
  func.func @transform_1(%arg0: i32, %arg1: i32) -> (i32, i32) {
    %c0_i32 = arith.constant 0 : i32
    %c0_i32_0 = arith.constant 0 : i32
    return %c0_i32, %arg1 : i32, i32
  }
  func.func @transform_2(%arg0: i32, %arg1: i32) -> (i32, i32) {
    %c0_i32 = arith.constant 0 : i32
    %c0_i32_0 = arith.constant 0 : i32
    return %c0_i32, %arg1 : i32, i32
  }
  func.func @transform_3(%arg0: i32, %arg1: i32) -> (i32, i32) {
    %c0_i32 = arith.constant 0 : i32
    %c0_i32_0 = arith.constant 0 : i32
    return %arg1, %c0_i32 : i32, i32
  }
  func.func @transform_4(%arg0: i32, %arg1: i32) -> (i32, i32) {
    %c0_i32 = arith.constant 0 : i32
    %c0_i32_0 = arith.constant 0 : i32
    %c0_i32_1 = arith.constant 0 : i32
    return %c0_i32, %c0_i32_0 : i32, i32
  }
  func.func @transform_5(%arg0: i32, %arg1: i32) -> (i32, i32) {
    %c0_i32 = arith.constant 0 : i32
    %c0_i32_0 = arith.constant 0 : i32
    return %arg0, %c0_i32 : i32, i32
  }
}

</mosaic_0001>

<llo_original>
// kernel: feed_forward.1
$region0: #{feed_forward.1}
  #allocation0 [shape = 'u32[]', space=smem, size = 0x4, offset = 0x4, fixed_abs, tag = 'smem constant byte address 0x4 - core index']
  #allocation1 [shape = 'u32[72,128]{1,0:T(1,128)}', space=vmem, size = 0x9000, scoped, tag = 'internal scratch']
  #allocation2 [shape = 'f32[8,128]{1,0:T(8,128)}', space=vmem, size = 0x1000, scoped, tag = 'scratch operand']
  %s0 = inlined_call_operand.vmem [shape: f32[16,128], index: 0, kind: input, shape index: {}]
  %s1 = inlined_call_operand.hbm [shape: f32[128,128], index: 1, kind: input, shape index: {}]
  %s2 = inlined_call_operand.vmem [shape: f32[1,128], index: 2, kind: input, shape index: {}]
  %s3 = inlined_call_operand.hbm [shape: f32[128,128], index: 3, kind: input, shape index: {}]
  %s4 = inlined_call_operand.vmem [shape: f32[1,128], index: 4, kind: input, shape index: {}]
  %s5 = inlined_call_operand.vmem [shape: f32[16,128], index: 5, kind: output, shape index: {}]
  %s6 = sld [smem:[#allocation0]]
  $region73: #{feed_forward.1} parent=0
    _
  %s8 = ssub.s32 1, %s6
  %s9 = scalar_select 0, %s8, %s6
  $region1: #{feed_forward.1} parent=0
    #allocation3 [shape = 'u8[65536]{0}', space=vmem, size = 0x10000, scoped, tag = 'input window, operand 1, single buffered']
    #allocation4 [shape = 's32[2]{0}', space=sflag, size = 0x8, scoped, tag = 'scoped memory for feed_forward.1']
    #allocation5 [shape = 'u8[65536]{0}', space=vmem, size = 0x10000, scoped, tag = 'input window, operand 3, single buffered']
    #allocation6 [shape = 's32[1]{0}', space=sflag, size = 0x4, scoped, tag = 'scoped memory for feed_forward.1']
    %10 = vsyncpa [#allocation4], 0
    %11 = vsyncpa [#allocation6], 0
    loop: start=0, step=1, limit=4
    $region2: #{feed_forward.1} parent=1 // loop_pre_header
      _
    $region3: #{feed_forward.1} parent=1 // loop_header
      %s13 = sphi 0, %s17
      %p14 = scmp.ge.s32.totalorder %s13, 4
      %s20 = sphi 0, %s32
      %s21 = sphi 0, %s28
      %s22 = sphi 0, %s20
      %s23 = sphi 0, %s21
      %s24 = sphi 0, %s22
      %s25 = sphi 0, %s23
      %s35 = sphi 0, %s37
      %s38 = sphi 0, %s35
      %s39 = sphi 0, %s38
      %s55 = sphi 0, %s39
      %s61 = sphi 0, %s63
      %s64 = sphi 0, %s61
      %s65 = sphi 0, %s64
      %s81 = sphi 0, %s65
      %s87 = sphi 0, %s89
      %s90 = sphi 0, %s87
      %s91 = sphi 0, %s90
      %s107 = sphi 0, %s91
      %s113 = sphi 0, %s115
      %s116 = sphi 0, %s113
      %s117 = sphi 0, %s116
      %s133 = sphi 0, %s117
      %s137 = sphi 0, %s137
      %s139 = sphi 0, %s137
      %s140 = sphi 0, %s139
      %s154 = sphi 0, %s140
      %s160 = sphi 0, %s162
      %s163 = sphi 0, %s160
      %s164 = sphi 0, %s163
      %s180 = sphi 0, %s164
    $region4: #{feed_forward.1} parent=1 // loop_header_branch
      %16 = sbr.rel (%p14) target = $region8
    $region5: #{feed_forward.1} parent=1 // loop_body
      %s18 = ssub.s32 %s13, 1
      %s19 = ssub.s32 %s13, 2
      %s26 = sadd.s32 1, %s21
      %p27 = scmp.ge.s32.totalorder %s26, 1
      %s28 = scalar_select %p27, 0, %s26
      %s29 = sadd.s32 1, %s20
      %s30 = scalar_select %p27, %s29, %s20
      %p31 = scmp.ge.s32.totalorder %s30, 2
      %s32 = scalar_select %p31, 0, %s30
      %s33 = ssub.s32 %s20, %s32
      %p34 = scmp.eq.s32.totalorder %s33, 0
      %s36 = sadd.s32 %s35, 1
      %s37 = scalar_select %p34, %s35, %s36
      %p40 = pneg %p34
      %p41 = scmp.eq.s32.totalorder %s13, 1
      %p42 = por %p40, %p41
      %p43 = scmp.ne.s32.totalorder %s35, %s38
      %p44 = scmp.eq.s32.totalorder %s13, 0
      %p45 = por %p43, %p44
      %p46 = scmp.ne.s32.totalorder %s35, %s38
      %p47 = scmp.eq.s32.totalorder %s18, 1
      %p48 = por %p46, %p47
      %p49 = scmp.ne.s32.totalorder %s38, %s39
      %p50 = scmp.eq.s32.totalorder %s18, 0
      %p51 = por %p49, %p50
      %p52 = scmp.ne.s32.totalorder %s38, %s39
      %p53 = scmp.eq.s32.totalorder %s19, 1
      %p54 = por %p52, %p53
      %p56 = scmp.ne.s32.totalorder %s39, %s55
      %p57 = scmp.eq.s32.totalorder %s19, 0
      %p58 = por %p56, %p57
      %s59 = ssub.s32 %s21, %s28
      %p60 = scmp.eq.s32.totalorder %s59, 0
      %s62 = sadd.s32 %s61, 1
      %s63 = scalar_select %p60, %s61, %s62
      %p66 = pneg %p60
      %p67 = scmp.eq.s32.totalorder %s13, 1
      %p68 = por %p66, %p67
      %p69 = scmp.ne.s32.totalorder %s61, %s64
      %p70 = scmp.eq.s32.totalorder %s13, 0
      %p71 = por %p69, %p70
      %p72 = scmp.ne.s32.totalorder %s61, %s64
      %p73 = scmp.eq.s32.totalorder %s18, 1
      %p74 = por %p72, %p73
      %p75 = scmp.ne.s32.totalorder %s64, %s65
      %p76 = scmp.eq.s32.totalorder %s18, 0
      %p77 = por %p75, %p76
      %p78 = scmp.ne.s32.totalorder %s64, %s65
      %p79 = scmp.eq.s32.totalorder %s19, 1
      %p80 = por %p78, %p79
      %p82 = scmp.ne.s32.totalorder %s65, %s81
      %p83 = scmp.eq.s32.totalorder %s19, 0
      %p84 = por %p82, %p83
      %s85 = ssub.s32 %s21, %s28
      %p86 = scmp.eq.s32.totalorder %s85, 0
      %s88 = sadd.s32 %s87, 1
      %s89 = scalar_select %p86, %s87, %s88
      %p92 = pneg %p86
      %p93 = scmp.eq.s32.totalorder %s13, 1
      %p94 = por %p92, %p93
      %p95 = scmp.ne.s32.totalorder %s87, %s90
      %p96 = scmp.eq.s32.totalorder %s13, 0
      %p97 = por %p95, %p96
      %p98 = scmp.ne.s32.totalorder %s87, %s90
      %p99 = scmp.eq.s32.totalorder %s18, 1
      %p100 = por %p98, %p99
      %p101 = scmp.ne.s32.totalorder %s90, %s91
      %p102 = scmp.eq.s32.totalorder %s18, 0
      %p103 = por %p101, %p102
      %p104 = scmp.ne.s32.totalorder %s90, %s91
      %p105 = scmp.eq.s32.totalorder %s19, 1
      %p106 = por %p104, %p105
      %p108 = scmp.ne.s32.totalorder %s91, %s107
      %p109 = scmp.eq.s32.totalorder %s19, 0
      %p110 = por %p108, %p109
      %s111 = ssub.s32 %s21, %s28
      %p112 = scmp.eq.s32.totalorder %s111, 0
      %s114 = sadd.s32 %s113, 1
      %s115 = scalar_select %p112, %s113, %s114
      %p118 = pneg %p112
      %p119 = scmp.eq.s32.totalorder %s13, 1
      %p120 = por %p118, %p119
      %p121 = scmp.ne.s32.totalorder %s113, %s116
      %p122 = scmp.eq.s32.totalorder %s13, 0
      %p123 = por %p121, %p122
      %p124 = scmp.ne.s32.totalorder %s113, %s116
      %p125 = scmp.eq.s32.totalorder %s18, 1
      %p126 = por %p124, %p125
      %p127 = scmp.ne.s32.totalorder %s116, %s117
      %p128 = scmp.eq.s32.totalorder %s18, 0
      %p129 = por %p127, %p128
      %p130 = scmp.ne.s32.totalorder %s116, %s117
      %p131 = scmp.eq.s32.totalorder %s19, 1
      %p132 = por %p130, %p131
      %p134 = scmp.ne.s32.totalorder %s117, %s133
      %p135 = scmp.eq.s32.totalorder %s19, 0
      %p136 = por %p134, %p135
      %s138 = sadd.s32 %s137, 1
      %p141 = scmp.eq.s32.totalorder %s13, 1
      %p142 = scmp.ne.s32.totalorder %s137, %s139
      %p143 = scmp.eq.s32.totalorder %s13, 0
      %p144 = por %p142, %p143
      %p145 = scmp.ne.s32.totalorder %s137, %s139
      %p146 = scmp.eq.s32.totalorder %s18, 1
      %p147 = por %p145, %p146
      %p148 = scmp.ne.s32.totalorder %s139, %s140
      %p149 = scmp.eq.s32.totalorder %s18, 0
      %p150 = por %p148, %p149
      %p151 = scmp.ne.s32.totalorder %s139, %s140
      %p152 = scmp.eq.s32.totalorder %s19, 1
      %p153 = por %p151, %p152
      %p155 = scmp.ne.s32.totalorder %s140, %s154
      %p156 = scmp.eq.s32.totalorder %s19, 0
      %p157 = por %p155, %p156
      %s158 = ssub.s32 %s20, %s32
      %p159 = scmp.eq.s32.totalorder %s158, 0
      %s161 = sadd.s32 %s160, 1
      %s162 = scalar_select %p159, %s160, %s161
      %p165 = pneg %p159
      %p166 = scmp.eq.s32.totalorder %s13, 1
      %p167 = por %p165, %p166
      %p168 = scmp.ne.s32.totalorder %s160, %s163
      %p169 = scmp.eq.s32.totalorder %s13, 0
      %p170 = por %p168, %p169
      %p171 = scmp.ne.s32.totalorder %s160, %s163
      %p172 = scmp.eq.s32.totalorder %s18, 1
      %p173 = por %p171, %p172
      %p174 = scmp.ne.s32.totalorder %s163, %s164
      %p175 = scmp.eq.s32.totalorder %s18, 0
      %p176 = por %p174, %p175
      %p177 = scmp.ne.s32.totalorder %s163, %s164
      %p178 = scmp.eq.s32.totalorder %s19, 1
      %p179 = por %p177, %p178
      %p181 = scmp.ne.s32.totalorder %s164, %s180
      %p182 = scmp.eq.s32.totalorder %s19, 0
      %p183 = por %p181, %p182
      %p184 = scmp.le.s32.totalorder 1, %s13
      %p185 = scmp.lt.s32.totalorder %s13, 3
      %p186 = pnand %p184, %p185
      %p187 = pneg %p186
      // Predicated region
      $region9: #{feed_forward.1} parent=5 // pred_check
        _
      $region10: #{feed_forward.1} parent=5 // pred_check_branch
        %189 = sbr.rel (%p186) target = $region12
      $region11: #{feed_forward.1} parent=5 // pred_region
        %s190 = ssub.s32 %s13, 1
        // Predicated region
        $region13: #{feed_forward.1} parent=11 // pred_check
          %p191 = pneg %p77
        $region14: #{feed_forward.1} parent=11 // pred_check_branch
          %193 = sbr.rel (%p191) target = $region16
        $region15: #{feed_forward.1} parent=11 // pred_region
          %195 = vsyncadd [#allocation4], 0
          %s196 = smul.addr %s23, 8
          %s197 = scalar_lea.hbm %s1, %s196
          %s198 = sshll.u32 %s197, 4
          %s199 = int_to_ptr.hbm [resolvable:$true] %s198
          %s200 = sshll.u32 [#allocation3], 4
          %s201 = int_to_ptr.vmem [resolvable:$true] %s200
          %206 = dma.hbm_to_vmem [thread:$0]  %s199, 2048, %s201, [#allocation4], 128, 128, 8
        $region16: #{feed_forward.1} parent=11 // pred_fallthru
          _
        // Predicated region
        $region17: #{feed_forward.1} parent=11 // pred_check
          %p207 = pneg %p103
        $region18: #{feed_forward.1} parent=11 // pred_check_branch
          %209 = sbr.rel (%p207) target = $region20
        $region19: #{feed_forward.1} parent=11 // pred_region
          %p210 = scmp.lt.s32.totalorder %s23, 0
          %s211 = scalar_select %p210, %s23, 0
          %s212 = scalar_lea.vmem %s2, %s211
        $region20: #{feed_forward.1} parent=11 // pred_fallthru
          _
        // Predicated region
        $region21: #{feed_forward.1} parent=11 // pred_check
          %p213 = pneg %p129
        $region22: #{feed_forward.1} parent=11 // pred_check_branch
          %215 = sbr.rel (%p213) target = $region24
        $region23: #{feed_forward.1} parent=11 // pred_region
          %s216 = smul.u32 16, %s23
          %218 = vsyncadd [#allocation6], 0
          %s219 = smul.addr %s216, 8
          %s220 = scalar_lea.hbm %s3, %s219
          %s221 = sshll.u32 %s220, 4
          %s222 = int_to_ptr.hbm [resolvable:$true] %s221
          %s223 = sshll.u32 [#allocation5], 4
          %s224 = int_to_ptr.vmem [resolvable:$true] %s223
          %229 = dma.hbm_to_vmem [thread:$0]  %s222, 2048, %s224, [#allocation6], 128, 128, 8
        $region24: #{feed_forward.1} parent=11 // pred_fallthru
          _
        // Predicated region
        $region25: #{feed_forward.1} parent=11 // pred_check
          %p230 = pneg %p150
        $region26: #{feed_forward.1} parent=11 // pred_check_branch
          %232 = sbr.rel (%p230) target = $region28
        $region27: #{feed_forward.1} parent=11 // pred_region
          _
        $region28: #{feed_forward.1} parent=11 // pred_fallthru
          _
      $region12: #{feed_forward.1} parent=5 // pred_fallthru
        _
      %p233 = scmp.lt.s32.totalorder %s13, 2
      // Predicated region
      $region29: #{feed_forward.1} parent=5 // pred_check
        %p234 = pneg %p233
      $region30: #{feed_forward.1} parent=5 // pred_check_branch
        %236 = sbr.rel (%p234) target = $region32
      $region31: #{feed_forward.1} parent=5 // pred_region
        // Predicated region
        $region33: #{feed_forward.1} parent=31 // pred_check
          %p237 = pneg %p45
        $region34: #{feed_forward.1} parent=31 // pred_check_branch
          %239 = sbr.rel (%p237) target = $region36
        $region35: #{feed_forward.1} parent=31 // pred_region
          %p240 = scmp.lt.s32.totalorder %s20, 1
          %s241 = scalar_select %p240, %s20, 1
          %s242 = smul.addr %s241, 8
          %s243 = scalar_lea.vmem %s0, %s242
        $region36: #{feed_forward.1} parent=31 // pred_fallthru
          _
      $region32: #{feed_forward.1} parent=5 // pred_fallthru
        _
      %p244 = scmp.le.s32.totalorder 1, %s13
      %p245 = scmp.lt.s32.totalorder %s13, 3
      %p246 = pnand %p244, %p245
      %p247 = pneg %p246
      // Predicated region
      $region37: #{feed_forward.1} parent=5 // pred_check
        _
      $region38: #{feed_forward.1} parent=5 // pred_check_branch
        %249 = sbr.rel (%p246) target = $region40
      $region39: #{feed_forward.1} parent=5 // pred_region
        %s250 = ssub.s32 %s13, 1
        // Predicated region
        $region41: #{feed_forward.1} parent=39 // pred_check
          %p251 = pneg %p77
        $region42: #{feed_forward.1} parent=39 // pred_check_branch
          %253 = sbr.rel (%p251) target = $region44
        $region43: #{feed_forward.1} parent=39 // pred_region
          %255 = dma.done [#allocation4], 2048
        $region44: #{feed_forward.1} parent=39 // pred_fallthru
          _
        // Predicated region
        $region45: #{feed_forward.1} parent=39 // pred_check
          %p256 = pneg %p129
        $region46: #{feed_forward.1} parent=39 // pred_check_branch
          %258 = sbr.rel (%p256) target = $region48
        $region47: #{feed_forward.1} parent=39 // pred_region
          %260 = dma.done [#allocation6], 2048
        $region48: #{feed_forward.1} parent=39 // pred_fallthru
          _
        %p261 = scmp.lt.s32.totalorder %s22, 1
        %s262 = scalar_select %p261, %s22, 1
        %s263 = smul.addr %s262, 8
        %s264 = scalar_lea.vmem %s0, %s263
        %p265 = pneg %p51
        %p266 = pneg %p48
        %p267 = pneg %p77
        %p268 = pneg %p74
        %p269 = scmp.lt.s32.totalorder %s23, 0
        %s270 = scalar_select %p269, %s23, 0
        %s271 = scalar_lea.vmem %s2, %s270
        %p272 = pneg %p103
        %p273 = pneg %p100
        %p274 = pneg %p129
        %p275 = pneg %p126
        %p276 = pneg %p150
        %p277 = pneg %p147
        %p278 = pneg %p176
        %p279 = pneg %p173
        %p280 = scmp.lt.s32.totalorder %s22, 1
        %s281 = scalar_select %p280, %s22, 1
        %s282 = smul.addr %s281, 8
        %s283 = scalar_lea.vmem %s5, %s282
        %p284 = scmp.lt.s32.totalorder %s22, 1
        %s285 = scalar_select %p284, %s22, 1
        %s286 = smul.addr %s285, 8
        %s287 = scalar_lea.vmem %s0, %s286
        %p288 = scmp.lt.s32.totalorder %s23, 0
        %s289 = scalar_select %p288, %s23, 0
        %s290 = scalar_lea.vmem %s2, %s289
        %s291 = smul.u32 16, %s23
        %p292 = scmp.lt.s32.totalorder %s22, 1
        %s293 = scalar_select %p292, %s22, 1
        %s294 = smul.addr %s293, 8
        %s295 = scalar_lea.vmem %s5, %s294
        %v296 = vld [vmem:[%s287] sm:$0xff]
        %v297 = vld [vmem:[#allocation3] sm:$0xff]
        %v298 = vld [vmem:[#allocation3 + $0x8] sm:$0xff]
        %v299 = vld [vmem:[#allocation3 + $0x10] sm:$0xff]
        %v300 = vld [vmem:[#allocation3 + $0x18] sm:$0xff]
        %v301 = vld [vmem:[#allocation3 + $0x20] sm:$0xff]
        %v302 = vld [vmem:[#allocation3 + $0x28] sm:$0xff]
        %v303 = vld [vmem:[#allocation3 + $0x30] sm:$0xff]
        %v304 = vld [vmem:[#allocation3 + $0x38] sm:$0xff]
        %v305 = vld [vmem:[#allocation3 + $0x40] sm:$0xff]
        %v306 = vld [vmem:[#allocation3 + $0x48] sm:$0xff]
        %v307 = vld [vmem:[#allocation3 + $0x50] sm:$0xff]
        %v308 = vld [vmem:[#allocation3 + $0x58] sm:$0xff]
        %v309 = vld [vmem:[#allocation3 + $0x60] sm:$0xff]
        %v310 = vld [vmem:[#allocation3 + $0x68] sm:$0xff]
        %v311 = vld [vmem:[#allocation3 + $0x70] sm:$0xff]
        %v312 = vld [vmem:[#allocation3 + $0x78] sm:$0xff]
        %v313 = vld [vmem:[%s290] sm:$0x1]
        %v315 = vperm.slane %v313, 0
        %317 = vmatpush.msra.mxu0 %v312
        %318 = vmatpush.msra.mxu0 %v311
        %319 = vmatpush.msra.mxu0 %v310
        %320 = vmatpush.msra.mxu0 %v309
        %321 = vmatpush.msra.mxu0 %v308
        %322 = vmatpush.msra.mxu0 %v307
        %323 = vmatpush.msra.mxu0 %v306
        %324 = vmatpush.msra.mxu0 %v305
        %325 = vmatpush.msra.mxu0 %v304
        %326 = vmatpush.msra.mxu0 %v303
        %327 = vmatpush.msra.mxu0 %v302
        %328 = vmatpush.msra.mxu0 %v301
        %329 = vmatpush.msra.mxu0 %v300
        %330 = vmatpush.msra.mxu0 %v299
        %331 = vmatpush.msra.mxu0 %v298
        %332 = vmatpush.msra.mxu0 %v297
        %333 = vmatmul.f32.gmra.mxu0 %v296
        %v334 = vpop.f32.mrf.mxu0
        %v335 = vadd.f32 %v315, %v334
        %336 = vdwg.mxu0
        %v337 = vmul.f32 %v335, 0.5
        %v338 = vmul.f32 %v335, 0.70710677
        %v339 = vmul.f32 %v338, %v338
        %v340 = vmin.f32 16.0, %v339
        %v341 = vmul.f32 %v340, 2.1237322e-06
        %v342 = vadd.f32 %v341, 0.00028619796
        %v343 = vmul.f32 %v340, %v342
        %v344 = vadd.f32 %v343, 0.0036580483
        %v345 = vmul.f32 %v340, %v344
        %v346 = vadd.f32 %v345, 0.05243302
        %v347 = vmul.f32 %v340, %v346
        %v348 = vadd.f32 %v347, 0.18741608
        %v349 = vmul.f32 %v340, %v348
        %v350 = vadd.f32 %v349, 1.1283791
        %v351 = vmul.f32 %v338, %v350
        %v352 = vmul.f32 %v340, 3.8918573e-05
        %v353 = vadd.f32 %v352, 0.001143296
        %v354 = vmul.f32 %v340, %v353
        %v355 = vadd.f32 %v354, 0.014752088
        %v356 = vmul.f32 %v340, %v355
        %v357 = vadd.f32 %v356, 0.112945676
        %v358 = vmul.f32 %v340, %v357
        %v359 = vadd.f32 %v358, 0.4994258
        %v360 = vmul.f32 %v340, %v359
        %v361 = vadd.f32 %v360, 1.0
        %v362 = vrcp.pop %v361
        %v363 = vmul.f32 %v361, %v362
        %v364 = vsub.f32 1.0, %v363
        %v365 = vmul.f32 %v362, %v364
        %v366 = vadd.f32 %v362, %v365
        %vm367 = vweird.f32 %v361
        %vm368 = vweird.f32 %v362
        %vm369 = vmor %vm367, %vm368
        %v370 = vsel %vm369, %v362, %v366
        %v371 = vand.u32 2147483647, %v361
        %vm372 = vcmp.eq.f32.partialorder %v371, 8.507059e+37
        %v373 = vand.u32 %v361, 2147483648
        %v374 = vor.u32 1.1754944e-38, %v373
        %v375 = vsel %vm372, %v374, %v370
        %v376 = vmul.f32 %v351, %v375
        %v377 = vmin.f32 %v376, 1.0
        %v378 = vmax.f32 %v377, -1.0
        %v379 = vadd.f32 %v378, 1.0
        %v380 = vmul.f32 %v337, %v379
        %v381 = vld [vmem:[#allocation5] sm:$0xff]
        %v382 = vld [vmem:[#allocation5 + $0x8] sm:$0xff]
        %v383 = vld [vmem:[#allocation5 + $0x10] sm:$0xff]
        %v384 = vld [vmem:[#allocation5 + $0x18] sm:$0xff]
        %v385 = vld [vmem:[#allocation5 + $0x20] sm:$0xff]
        %v386 = vld [vmem:[#allocation5 + $0x28] sm:$0xff]
        %v387 = vld [vmem:[#allocation5 + $0x30] sm:$0xff]
        %v388 = vld [vmem:[#allocation5 + $0x38] sm:$0xff]
        %v389 = vld [vmem:[#allocation5 + $0x40] sm:$0xff]
        %v390 = vld [vmem:[#allocation5 + $0x48] sm:$0xff]
        %v391 = vld [vmem:[#allocation5 + $0x50] sm:$0xff]
        %v392 = vld [vmem:[#allocation5 + $0x58] sm:$0xff]
        %v393 = vld [vmem:[#allocation5 + $0x60] sm:$0xff]
        %v394 = vld [vmem:[#allocation5 + $0x68] sm:$0xff]
        %v395 = vld [vmem:[#allocation5 + $0x70] sm:$0xff]
        %v396 = vld [vmem:[#allocation5 + $0x78] sm:$0xff]
        %397 = vmatpush.msra.mxu0 %v396
        %398 = vmatpush.msra.mxu0 %v395
        %399 = vmatpush.msra.mxu0 %v394
        %400 = vmatpush.msra.mxu0 %v393
        %401 = vmatpush.msra.mxu0 %v392
        %402 = vmatpush.msra.mxu0 %v391
        %403 = vmatpush.msra.mxu0 %v390
        %404 = vmatpush.msra.mxu0 %v389
        %405 = vmatpush.msra.mxu0 %v388
        %406 = vmatpush.msra.mxu0 %v387
        %407 = vmatpush.msra.mxu0 %v386
        %408 = vmatpush.msra.mxu0 %v385
        %409 = vmatpush.msra.mxu0 %v384
        %410 = vmatpush.msra.mxu0 %v383
        %411 = vmatpush.msra.mxu0 %v382
        %412 = vmatpush.msra.mxu0 %v381
        %413 = vmatmul.f32.gmra.mxu0 %v380
        %v414 = vpop.f32.mrf.mxu0
        %v415 = vadd.f32 0.0, %v414
        %416 = vdwg.mxu0
        %p417 = scmp.eq.s32.totalorder %s23, 0
        // Predicated region
        $region49: #{feed_forward.1} parent=39 // pred_check
          %p418 = pneg %p417
        $region50: #{feed_forward.1} parent=39 // pred_check_branch
          %420 = sbr.rel (%p418) target = $region52
        $region51: #{feed_forward.1} parent=39 // pred_region
          %421 = vst [vmem:[#allocation2] sm:$0xff] %v415
        $region52: #{feed_forward.1} parent=39 // pred_fallthru
          _
        %p422 = scmp.gt.s32.totalorder %s23, 0
        // Predicated region
        $region53: #{feed_forward.1} parent=39 // pred_check
          %p423 = pneg %p422
        $region54: #{feed_forward.1} parent=39 // pred_check_branch
          %425 = sbr.rel (%p423) target = $region56
        $region55: #{feed_forward.1} parent=39 // pred_region
          %v426 = vld [vmem:[#allocation2] sm:$0xff]
          %v427 = vadd.f32 %v426, %v415
          %428 = vst [vmem:[#allocation2] sm:$0xff] %v427
        $region56: #{feed_forward.1} parent=39 // pred_fallthru
          _
        // Predicated region
        $region57: #{feed_forward.1} parent=39 // pred_check
          %p429 = pneg %p417
        $region58: #{feed_forward.1} parent=39 // pred_check_branch
          %431 = sbr.rel (%p429) target = $region60
        $region59: #{feed_forward.1} parent=39 // pred_region
          %v432 = vld [vmem:[#allocation2] sm:$0xff]
          %v433 = vld [vmem:[%s4] sm:$0x1]
          %v435 = vperm.slane %v433, 0
          %v437 = vadd.f32 %v432, %v435
          %438 = vst [vmem:[%s295] sm:$0xff] %v437
        $region60: #{feed_forward.1} parent=39 // pred_fallthru
          _
        %p439 = scmp.lt.s32.totalorder %s22, 1
        %s440 = scalar_select %p439, %s22, 1
        %s441 = smul.addr %s440, 8
        %s442 = scalar_lea.vmem %s5, %s441
        // Predicated region
        $region61: #{feed_forward.1} parent=39 // pred_check
          %p443 = pneg %p173
        $region62: #{feed_forward.1} parent=39 // pred_check_branch
          %445 = sbr.rel (%p443) target = $region64
        $region63: #{feed_forward.1} parent=39 // pred_region
          _
        $region64: #{feed_forward.1} parent=39 // pred_fallthru
          _
      $region40: #{feed_forward.1} parent=5 // pred_fallthru
        _
      %p446 = scmp.le.s32.totalorder 2, %s13
      // Predicated region
      $region65: #{feed_forward.1} parent=5 // pred_check
        %p447 = pneg %p446
      $region66: #{feed_forward.1} parent=5 // pred_check_branch
        %449 = sbr.rel (%p447) target = $region68
      $region67: #{feed_forward.1} parent=5 // pred_region
        %s450 = ssub.s32 %s13, 2
        // Predicated region
        $region69: #{feed_forward.1} parent=67 // pred_check
          %p451 = pneg %p179
        $region70: #{feed_forward.1} parent=67 // pred_check_branch
          %453 = sbr.rel (%p451) target = $region72
        $region71: #{feed_forward.1} parent=67 // pred_region
          %p454 = scmp.lt.s32.totalorder %s24, 1
          %s455 = scalar_select %p454, %s24, 1
          %s456 = smul.addr %s455, 8
          %s457 = scalar_lea.vmem %s5, %s456
        $region72: #{feed_forward.1} parent=67 // pred_fallthru
          _
      $region68: #{feed_forward.1} parent=5 // pred_fallthru
        _
    $region6: #{feed_forward.1} parent=1 // loop_footer
      %s17 = sadd.s32 1, %s13
    $region7: #{feed_forward.1} parent=1 // loop_footer_branch
      %12 = sbr.rel target = $region3
    $region8: #{feed_forward.1} parent=1 // loop_exit
      _
    %458 = vsyncpa [#allocation4], 1
    %s459 = scalar_lea.sflag [#allocation4], 1
    %460 = vsyncpa %s459, 1
    %461 = vsyncpa [#allocation6], 1

</llo_original>
